<compile_context>
chip_gen: v7x
topology: tpu7x:2x2x1
jax: 0.10.0
libtpu: 0.0.40
codegen_flags: <defaults>
</compile_context>

<pallas_src>
import numpy as np

import jax
import jax.numpy as jnp
from jax import lax
from jax.experimental import pallas as pl
from jax.experimental.pallas import tpu as pltpu

KH = KW = 6
STRIDE = 2
PAD = 2


def _phase_conv_kernel(x_ref, w_ref, b_ref, o_ref):
    """One (batch, row-tile) step of the fused 4-phase 3x3 convolution.

    x_ref: (H+2, W, 3*Cin)    kw-folded, zero-padded input image (resident across
                              the row-tile grid axis; DMA'd once per batch element)
    w_ref: (3, 3*Cin, 4*Cout) one (3*Cin, 4*Cout) weight tile per kh tap
                              (phases folded into the matmul N dim), grid-resident
    b_ref: (1, 4*Cout)        bias replicated over the 4 phases
    o_ref: (TM*W, 4*Cout)     row-tile of the phase-major output
    """
    _, W, K3 = x_ref.shape
    TMW, _ = o_ref.shape
    TM = TMW // W
    row0 = pl.program_id(1) * TM

    # kh tap a reads rows [row0+a, row0+a+TM) of the padded image.  Slicing along
    # the untiled leading dim and collapsing (TM, W, 3Cin)->(TM*W, 3Cin) is
    # layout-preserving for W % 8 == 0 (no in-kernel relayout copies).
    x0 = x_ref[pl.ds(row0 + 0, TM), :, :].reshape(TMW, K3)
    acc = jnp.dot(x0, w_ref[0], preferred_element_type=jnp.float32)

    x1 = x_ref[pl.ds(row0 + 1, TM), :, :].reshape(TMW, K3)
    acc = acc + jnp.dot(x1, w_ref[1], preferred_element_type=jnp.float32)

    x2 = x_ref[pl.ds(row0 + 2, TM), :, :].reshape(TMW, K3)
    acc = acc + jnp.dot(x2, w_ref[2], preferred_element_type=jnp.float32)

    o_ref[...] = (acc + b_ref[...]).astype(o_ref.dtype)


def _pick_row_tile(H, W):
    """Row tile: divides H, keeps the matmul M dim <= 1024, prefers sublane-aligned
    (TM*W % 8 == 0) tiles and >= 2 tiles per image for pipelining."""
    divisors = [t for t in range(1, H + 1) if H % t == 0]
    fitting = [t for t in divisors if t * W <= 1024] or [1]
    aligned = [t for t in fitting if (t * W) % 8 == 0] or fitting
    multi = [t for t in aligned if t < H] or aligned
    return max(multi)


def re_conv_622_forward(x_nchw, weight, bias=None):
    """ConvTranspose2d(kernel=6, stride=2, padding=2) forward.

    x_nchw : (N, Cin, H, W)
    weight : (Cin, Cout, 6, 6)   -- PyTorch ConvTranspose2d weight layout
    bias   : (Cout,) or None
    returns: (N, Cout, 2H, 2W)
    """
    N, Cin, H, W = x_nchw.shape
    Cout = weight.shape[1]
    if bias is None:
        bias = jnp.zeros((Cout,), x_nchw.dtype)

    # ---- input prep (XLA): NCHW -> NHWC, pad by 1, fold the 3 kw taps into channels.
    x = jnp.transpose(x_nchw, (0, 2, 3, 1))                       # (N, H, W, Cin)
    xp = jnp.pad(x, ((0, 0), (1, 1), (1, 1), (0, 0)))             # (N, H+2, W+2, Cin)
    xrow = jnp.concatenate([xp[:, :, b:b + W, :] for b in range(3)], axis=-1)
    # xrow[n, i, j, b*Cin + ci] = xp[n, i, j + b, ci]             # (N, H+2, W, 3*Cin)

    # ---- weight prep: sub-pixel decomposition of the 6x6 transposed-conv kernel.
    # out[n, co, 2m+ph, 2j+pw] = bias[co]
    #     + sum_{a,b,ci} xp[n, m+a, j+b, ci] * weight[ci, co, 4+ph-2a, 4+pw-2b]
    ksel = np.array([[4 + ph - 2 * a for ph in range(2)] for a in range(3)])  # (3, 2)
    wg = weight[:, :, ksel, :]                                    # (Cin, Cout, a, ph, KW)
    wg = wg[:, :, :, :, ksel]                                     # (Cin, Cout, a, ph, b, pw)
    w_all = jnp.transpose(wg, (2, 4, 0, 3, 5, 1))                 # (a, b, ci, ph, pw, co)
    w_all = w_all.reshape(3, 3 * Cin, 4 * Cout)
    b_all = jnp.tile(bias, 4).reshape(1, 4 * Cout)                # (1, 4*Cout)

    # ---- pallas call: grid over (batch, output row tiles), both parallel.
    TM = _pick_row_tile(H, W)
    RT = H // TM

    itemsize = jnp.dtype(x_nchw.dtype).itemsize
    flops = 2 * 9 * Cin * Cout * (N * 4 * H * W)
    bytes_accessed = (xrow.size + w_all.size + b_all.size) * itemsize \
        + N * H * W * 4 * Cout * itemsize

    out = pl.pallas_call(
        _phase_conv_kernel,
        out_shape=jax.ShapeDtypeStruct((N, H * W, 4 * Cout), x_nchw.dtype),
        grid=(N, RT),
        in_specs=[
            # whole kw-folded image for batch n; resident across the row-tile axis
            pl.BlockSpec((None, H + 2, W, 3 * Cin), lambda n, r: (n, 0, 0, 0)),
            # single weight tile, resident across the whole grid
            pl.BlockSpec((3, 3 * Cin, 4 * Cout), lambda n, r: (0, 0, 0)),
            pl.BlockSpec((1, 4 * Cout), lambda n, r: (0, 0)),
        ],
        out_specs=pl.BlockSpec((None, TM * W, 4 * Cout), lambda n, r: (n, r, 0)),
        compiler_params=pltpu.CompilerParams(
            dimension_semantics=("parallel", "parallel"),
            vmem_limit_bytes=48 * 1024 * 1024,
        ),
        cost_estimate=pl.CostEstimate(
            flops=flops, transcendentals=0, bytes_accessed=bytes_accessed),
    )(xrow, w_all, b_all)

    # ---- phase interleave to NCHW: one fused XLA reshape+transpose pass.
    out = out.reshape(N, H, W, 2, 2, Cout)            # [n, m, j, ph, pw, co]
    out = jnp.transpose(out, (0, 5, 1, 3, 2, 4))      # [n, co, m, ph, j, pw]
    return out.reshape(N, Cout, 2 * H, 2 * W)


def _reference(x_nchw, weight, bias):
    """Pure-JAX reference: transposed conv as lhs-dilated conv with flipped kernel."""
    wf = jnp.transpose(weight[:, :, ::-1, ::-1], (1, 0, 2, 3))    # (Cout, Cin, KH, KW)
    out = lax.conv_general_dilated(
        x_nchw, wf, window_strides=(1, 1),
        padding=((KH - 1 - PAD, KH - 1 - PAD), (KW - 1 - PAD, KW - 1 - PAD)),
        lhs_dilation=(STRIDE, STRIDE), rhs_dilation=(1, 1),
        dimension_numbers=("NCHW", "OIHW", "NCHW"),
        precision=lax.Precision.HIGHEST)
    return out + bias[None, :, None, None]


if __name__ == "__main__":
    key = jax.random.PRNGKey(0)
    k_x, k_w, k_b = jax.random.split(key, 3)

    N, C_in, H, W = 2, 4, 16, 16
    C_out = 8

    x = jax.random.normal(k_x, (N, C_in, H, W), dtype=jnp.float32)
    # PyTorch ConvTranspose2d weight shape: (C_in, C_out, kH, kW)
    fan = C_in * KH * KW
    bound = 1.0 / (fan ** 0.5)
    weight = jax.random.uniform(k_w, (C_in, C_out, KH, KW),
                                minval=-bound, maxval=bound, dtype=jnp.float32)
    bias = jax.random.uniform(k_b, (C_out,),
                              minval=-bound, maxval=bound, dtype=jnp.float32)

    out = jax.block_until_ready(re_conv_622_forward(x, weight, bias))
    ref = jax.block_until_ready(_reference(x, weight, bias))

    assert out.shape == (N, C_out, 2 * H, 2 * W), out.shape
    max_err = float(jnp.max(jnp.abs(out - ref)))
    assert jnp.allclose(out, ref, atol=1e-3, rtol=1e-3), f"mismatch, max_err={max_err}"

    print("KERNEL_OK")
</pallas_src>

<mosaic_0001>
module attributes {stable_mosaic.version = 11 : i64} {
  func.func @_phase_conv_kernel(%arg0: i32, %arg1: i32, %arg2: memref<1x18x16x12xf32, #tpu.memory_space<vmem>>, %arg3: memref<3x12x32xf32, #tpu.memory_space<vmem>>, %arg4: memref<1x32xf32, #tpu.memory_space<vmem>>, %arg5: memref<1x128x32xf32, #tpu.memory_space<vmem>>) attributes {dimension_semantics = [#tpu.dimension_semantics<parallel>, #tpu.dimension_semantics<parallel>], iteration_bounds = array<i64: 2, 2>, scalar_prefetch = 0 : i64, scratch_operands = 0 : i64, tpu.core_type = #tpu.core_type<tc>, window_params = [{transform_indices = @transform_0, window_bounds = array<i64: 1, 18, 16, 12>}, {pipeline_mode = #tpu.pipeline_mode<synchronous>, transform_indices = @transform_1, window_bounds = array<i64: 3, 12, 32>}, {pipeline_mode = #tpu.pipeline_mode<synchronous>, transform_indices = @transform_2, window_bounds = array<i64: 1, 32>}, {transform_indices = @transform_3, window_bounds = array<i64: 1, 128, 32>}]} {
    %c8_i32 = arith.constant 8 : i32
    %0 = arith.muli %arg1, %c8_i32 : i32
    %c0_i32 = arith.constant 0 : i32
    %1 = arith.addi %0, %c0_i32 : i32
    %c0 = arith.constant 0 : index
    %2 = arith.index_cast %1 : i32 to index
    %c0_0 = arith.constant 0 : index
    %c0_1 = arith.constant 0 : index
    %3 = vector.load %arg2[%c0, %2, %c0_0, %c0_1] : memref<1x18x16x12xf32, #tpu.memory_space<vmem>>, vector<1x8x16x12xf32>
    %4 = vector.shape_cast %3 : vector<1x8x16x12xf32> to vector<8x16x12xf32>
    %5 = vector.shape_cast %4 : vector<8x16x12xf32> to vector<128x12xf32>
    %c0_2 = arith.constant 0 : index
    %c0_3 = arith.constant 0 : index
    %c0_4 = arith.constant 0 : index
    %6 = vector.load %arg3[%c0_2, %c0_3, %c0_4] : memref<3x12x32xf32, #tpu.memory_space<vmem>>, vector<1x12x32xf32>
    %7 = vector.shape_cast %6 : vector<1x12x32xf32> to vector<12x32xf32>
    %cst = arith.constant dense<0.000000e+00> : vector<128x32xf32>
    %8 = tpu.matmul %5, %7, %cst {dimension_numbers = #tpu.dot_dimension_numbers<[1], [0], [0], [1], [0, 0, 1, 1], [], []>} : vector<128x12xf32>, vector<12x32xf32>, vector<128x32xf32> -> vector<128x32xf32>
    %c1_i32 = arith.constant 1 : i32
    %9 = arith.addi %0, %c1_i32 : i32
    %c0_5 = arith.constant 0 : index
    %10 = arith.index_cast %9 : i32 to index
    %c0_6 = arith.constant 0 : index
    %c0_7 = arith.constant 0 : index
    %11 = vector.load %arg2[%c0_5, %10, %c0_6, %c0_7] : memref<1x18x16x12xf32, #tpu.memory_space<vmem>>, vector<1x8x16x12xf32>
    %12 = vector.shape_cast %11 : vector<1x8x16x12xf32> to vector<8x16x12xf32>
    %13 = vector.shape_cast %12 : vector<8x16x12xf32> to vector<128x12xf32>
    %c1 = arith.constant 1 : index
    %c0_8 = arith.constant 0 : index
    %c0_9 = arith.constant 0 : index
    %14 = vector.load %arg3[%c1, %c0_8, %c0_9] : memref<3x12x32xf32, #tpu.memory_space<vmem>>, vector<1x12x32xf32>
    %15 = vector.shape_cast %14 : vector<1x12x32xf32> to vector<12x32xf32>
    %cst_10 = arith.constant dense<0.000000e+00> : vector<128x32xf32>
    %16 = tpu.matmul %13, %15, %cst_10 {dimension_numbers = #tpu.dot_dimension_numbers<[1], [0], [0], [1], [0, 0, 1, 1], [], []>} : vector<128x12xf32>, vector<12x32xf32>, vector<128x32xf32> -> vector<128x32xf32>
    %17 = arith.addf %8, %16 : vector<128x32xf32>
    %c2_i32 = arith.constant 2 : i32
    %18 = arith.addi %0, %c2_i32 : i32
    %c0_11 = arith.constant 0 : index
    %19 = arith.index_cast %18 : i32 to index
    %c0_12 = arith.constant 0 : index
    %c0_13 = arith.constant 0 : index
    %20 = vector.load %arg2[%c0_11, %19, %c0_12, %c0_13] : memref<1x18x16x12xf32, #tpu.memory_space<vmem>>, vector<1x8x16x12xf32>
    %21 = vector.shape_cast %20 : vector<1x8x16x12xf32> to vector<8x16x12xf32>
    %22 = vector.shape_cast %21 : vector<8x16x12xf32> to vector<128x12xf32>
    %c2 = arith.constant 2 : index
    %c0_14 = arith.constant 0 : index
    %c0_15 = arith.constant 0 : index
    %23 = vector.load %arg3[%c2, %c0_14, %c0_15] : memref<3x12x32xf32, #tpu.memory_space<vmem>>, vector<1x12x32xf32>
    %24 = vector.shape_cast %23 : vector<1x12x32xf32> to vector<12x32xf32>
    %cst_16 = arith.constant dense<0.000000e+00> : vector<128x32xf32>
    %25 = tpu.matmul %22, %24, %cst_16 {dimension_numbers = #tpu.dot_dimension_numbers<[1], [0], [0], [1], [0, 0, 1, 1], [], []>} : vector<128x12xf32>, vector<12x32xf32>, vector<128x32xf32> -> vector<128x32xf32>
    %26 = arith.addf %17, %25 : vector<128x32xf32>
    %c0_17 = arith.constant 0 : index
    %c0_18 = arith.constant 0 : index
    %27 = vector.load %arg4[%c0_17, %c0_18] : memref<1x32xf32, #tpu.memory_space<vmem>>, vector<1x32xf32>
    %28 = vector.broadcast %27 : vector<1x32xf32> to vector<128x32xf32>
    %29 = arith.addf %26, %28 : vector<128x32xf32>
    %c0_19 = arith.constant 0 : index
    %c0_20 = arith.constant 0 : index
    %c0_21 = arith.constant 0 : index
    %30 = vector.load %arg5[%c0_19, %c0_20, %c0_21] : memref<1x128x32xf32, #tpu.memory_space<vmem>>, vector<1x128x32xf32>
    %31 = vector.shape_cast %30 : vector<1x128x32xf32> to vector<128x32xf32>
    %32 = vector.shape_cast %29 : vector<128x32xf32> to vector<1x128x32xf32>
    tpu.vector_store %arg5[%c0_19, %c0_20, %c0_21], %32 {strides = array<i32>} : memref<1x128x32xf32, #tpu.memory_space<vmem>>, vector<1x128x32xf32>,
    return
  }
  func.func @transform_0(%arg0: i32, %arg1: i32) -> (i32, i32, i32, i32) {
    %c0_i32 = arith.constant 0 : i32
    %c0_i32_0 = arith.constant 0 : i32
    %c0_i32_1 = arith.constant 0 : i32
    %c0_i32_2 = arith.constant 0 : i32
    return %arg0, %c0_i32, %c0_i32_0, %c0_i32_1 : i32, i32, i32, i32
  }
  func.func @transform_1(%arg0: i32, %arg1: i32) -> (i32, i32, i32) {
    %c0_i32 = arith.constant 0 : i32
    %c0_i32_0 = arith.constant 0 : i32
    %c0_i32_1 = arith.constant 0 : i32
    %c0_i32_2 = arith.constant 0 : i32
    return %c0_i32, %c0_i32_0, %c0_i32_1 : i32, i32, i32
  }
  func.func @transform_2(%arg0: i32, %arg1: i32) -> (i32, i32) {
    %c0_i32 = arith.constant 0 : i32
    %c0_i32_0 = arith.constant 0 : i32
    %c0_i32_1 = arith.constant 0 : i32
    return %c0_i32, %c0_i32_0 : i32, i32
  }
  func.func @transform_3(%arg0: i32, %arg1: i32) -> (i32, i32, i32) {
    %c0_i32 = arith.constant 0 : i32
    %c0_i32_0 = arith.constant 0 : i32
    return %arg0, %arg1, %c0_i32 : i32, i32, i32
  }
}

</mosaic_0001>

<llo_original>
// kernel: tpu_custom_call.1
$region0: #{tpu_custom_call.1}
  #allocation0 [shape = 'u32[]', space=smem, size = 0x4, offset = 0x4, fixed_abs, tag = 'smem constant byte address 0x4 - core index']
  #allocation1 [shape = 'u32[144,128]{1,0:T(1,128)}', space=vmem, size = 0x12000, scoped, tag = 'internal scratch']
  %s0 = inlined_call_operand.vmem [shape: f32[2,18,16,12], index: 0, kind: input, shape index: {}]
  %s1 = inlined_call_operand.vmem [shape: f32[3,12,32], index: 1, kind: input, shape index: {}]
  %s2 = inlined_call_operand.vmem [shape: f32[1,32], index: 2, kind: input, shape index: {}]
  %s3 = inlined_call_operand.vmem [shape: f32[2,256,32], index: 3, kind: output, shape index: {}]
  %s4 = sld [smem:[#allocation0]]
  $region45: #{tpu_custom_call.1} parent=0
    _
  %s6 = ssub.s32 1, %s4
  %s7 = scalar_select 0, %s6, %s4
  loop: start=0, step=1, limit=6
  $region2: #{tpu_custom_call.1} parent=0 // loop_pre_header
    _
  $region3: #{tpu_custom_call.1} parent=0 // loop_header
    %s9 = sphi 0, %s13
    %p10 = scmp.ge.s32.totalorder %s9, 6
    %s16 = sphi 0, %s28
    %s17 = sphi 0, %s24
    %s18 = sphi 0, %s16
    %s19 = sphi 0, %s17
    %s20 = sphi 0, %s18
    %s21 = sphi 0, %s19
    %s31 = sphi 0, %s33
    %s34 = sphi 0, %s31
    %s35 = sphi 0, %s34
    %s51 = sphi 0, %s35
    %s55 = sphi 0, %s55
    %s57 = sphi 0, %s55
    %s58 = sphi 0, %s57
    %s72 = sphi 0, %s58
    %s76 = sphi 0, %s76
    %s78 = sphi 0, %s76
    %s79 = sphi 0, %s78
    %s93 = sphi 0, %s79
    %s101 = sphi 0, %s103
    %s104 = sphi 0, %s101
    %s105 = sphi 0, %s104
    %s121 = sphi 0, %s105
  $region4: #{tpu_custom_call.1} parent=0 // loop_header_branch
    %12 = sbr.rel (%p10) target = $region8
  $region5: #{tpu_custom_call.1} parent=0 // loop_body
    %s14 = ssub.s32 %s9, 1
    %s15 = ssub.s32 %s9, 2
    %s22 = sadd.s32 1, %s17
    %p23 = scmp.ge.s32.totalorder %s22, 2
    %s24 = scalar_select %p23, 0, %s22
    %s25 = sadd.s32 1, %s16
    %s26 = scalar_select %p23, %s25, %s16
    %p27 = scmp.ge.s32.totalorder %s26, 2
    %s28 = scalar_select %p27, 0, %s26
    %s29 = ssub.s32 %s16, %s28
    %p30 = scmp.eq.s32.totalorder %s29, 0
    %s32 = sadd.s32 %s31, 1
    %s33 = scalar_select %p30, %s31, %s32
    %p36 = pneg %p30
    %p37 = scmp.eq.s32.totalorder %s9, 3
    %p38 = por %p36, %p37
    %p39 = scmp.ne.s32.totalorder %s31, %s34
    %p40 = scmp.eq.s32.totalorder %s9, 0
    %p41 = por %p39, %p40
    %p42 = scmp.ne.s32.totalorder %s31, %s34
    %p43 = scmp.eq.s32.totalorder %s14, 3
    %p44 = por %p42, %p43
    %p45 = scmp.ne.s32.totalorder %s34, %s35
    %p46 = scmp.eq.s32.totalorder %s14, 0
    %p47 = por %p45, %p46
    %p48 = scmp.ne.s32.totalorder %s34, %s35
    %p49 = scmp.eq.s32.totalorder %s15, 3
    %p50 = por %p48, %p49
    %p52 = scmp.ne.s32.totalorder %s35, %s51
    %p53 = scmp.eq.s32.totalorder %s15, 0
    %p54 = por %p52, %p53
    %s56 = sadd.s32 %s55, 1
    %p59 = scmp.eq.s32.totalorder %s9, 3
    %p60 = scmp.ne.s32.totalorder %s55, %s57
    %p61 = scmp.eq.s32.totalorder %s9, 0
    %p62 = por %p60, %p61
    %p63 = scmp.ne.s32.totalorder %s55, %s57
    %p64 = scmp.eq.s32.totalorder %s14, 3
    %p65 = por %p63, %p64
    %p66 = scmp.ne.s32.totalorder %s57, %s58
    %p67 = scmp.eq.s32.totalorder %s14, 0
    %p68 = por %p66, %p67
    %p69 = scmp.ne.s32.totalorder %s57, %s58
    %p70 = scmp.eq.s32.totalorder %s15, 3
    %p71 = por %p69, %p70
    %p73 = scmp.ne.s32.totalorder %s58, %s72
    %p74 = scmp.eq.s32.totalorder %s15, 0
    %p75 = por %p73, %p74
    %s77 = sadd.s32 %s76, 1
    %p80 = scmp.eq.s32.totalorder %s9, 3
    %p81 = scmp.ne.s32.totalorder %s76, %s78
    %p82 = scmp.eq.s32.totalorder %s9, 0
    %p83 = por %p81, %p82
    %p84 = scmp.ne.s32.totalorder %s76, %s78
    %p85 = scmp.eq.s32.totalorder %s14, 3
    %p86 = por %p84, %p85
    %p87 = scmp.ne.s32.totalorder %s78, %s79
    %p88 = scmp.eq.s32.totalorder %s14, 0
    %p89 = por %p87, %p88
    %p90 = scmp.ne.s32.totalorder %s78, %s79
    %p91 = scmp.eq.s32.totalorder %s15, 3
    %p92 = por %p90, %p91
    %p94 = scmp.ne.s32.totalorder %s79, %s93
    %p95 = scmp.eq.s32.totalorder %s15, 0
    %p96 = por %p94, %p95
    %s97 = ssub.s32 %s16, %s28
    %s98 = ssub.s32 %s17, %s24
    %s99 = sor.u32 %s97, %s98
    %p100 = scmp.eq.s32.totalorder %s99, 0
    %s102 = sadd.s32 %s101, 1
    %s103 = scalar_select %p100, %s101, %s102
    %p106 = pneg %p100
    %p107 = scmp.eq.s32.totalorder %s9, 3
    %p108 = por %p106, %p107
    %p109 = scmp.ne.s32.totalorder %s101, %s104
    %p110 = scmp.eq.s32.totalorder %s9, 0
    %p111 = por %p109, %p110
    %p112 = scmp.ne.s32.totalorder %s101, %s104
    %p113 = scmp.eq.s32.totalorder %s14, 3
    %p114 = por %p112, %p113
    %p115 = scmp.ne.s32.totalorder %s104, %s105
    %p116 = scmp.eq.s32.totalorder %s14, 0
    %p117 = por %p115, %p116
    %p118 = scmp.ne.s32.totalorder %s104, %s105
    %p119 = scmp.eq.s32.totalorder %s15, 3
    %p120 = por %p118, %p119
    %p122 = scmp.ne.s32.totalorder %s105, %s121
    %p123 = scmp.eq.s32.totalorder %s15, 0
    %p124 = por %p122, %p123
    %p125 = scmp.le.s32.totalorder 1, %s9
    %p126 = scmp.lt.s32.totalorder %s9, 5
    %p127 = pnand %p125, %p126
    %p128 = pneg %p127
    // Predicated region
    $region9: #{tpu_custom_call.1} parent=5 // pred_check
      _
    $region10: #{tpu_custom_call.1} parent=5 // pred_check_branch
      %130 = sbr.rel (%p127) target = $region12
    $region11: #{tpu_custom_call.1} parent=5 // pred_region
      %s131 = ssub.s32 %s9, 1
      // Predicated region
      $region13: #{tpu_custom_call.1} parent=11 // pred_check
        %p132 = pneg %p68
      $region14: #{tpu_custom_call.1} parent=11 // pred_check_branch
        %134 = sbr.rel (%p132) target = $region16
      $region15: #{tpu_custom_call.1} parent=11 // pred_region
        _
      $region16: #{tpu_custom_call.1} parent=11 // pred_fallthru
        _
      // Predicated region
      $region17: #{tpu_custom_call.1} parent=11 // pred_check
        %p135 = pneg %p89
      $region18: #{tpu_custom_call.1} parent=11 // pred_check_branch
        %137 = sbr.rel (%p135) target = $region20
      $region19: #{tpu_custom_call.1} parent=11 // pred_region
        _
      $region20: #{tpu_custom_call.1} parent=11 // pred_fallthru
        _
    $region12: #{tpu_custom_call.1} parent=5 // pred_fallthru
      _
    %p138 = scmp.lt.s32.totalorder %s9, 4
    // Predicated region
    $region21: #{tpu_custom_call.1} parent=5 // pred_check
      %p139 = pneg %p138
    $region22: #{tpu_custom_call.1} parent=5 // pred_check_branch
      %141 = sbr.rel (%p139) target = $region24
    $region23: #{tpu_custom_call.1} parent=5 // pred_region
      // Predicated region
      $region25: #{tpu_custom_call.1} parent=23 // pred_check
        %p142 = pneg %p41
      $region26: #{tpu_custom_call.1} parent=23 // pred_check_branch
        %144 = sbr.rel (%p142) target = $region28
      $region27: #{tpu_custom_call.1} parent=23 // pred_region
        %p145 = scmp.lt.s32.totalorder %s16, 1
        %s146 = scalar_select %p145, %s16, 1
        %s147 = smul.addr %s146, 36
        %s148 = smul.addr %s147, 8
        %s149 = scalar_lea.vmem %s0, %s148
      $region28: #{tpu_custom_call.1} parent=23 // pred_fallthru
        _
    $region24: #{tpu_custom_call.1} parent=5 // pred_fallthru
      _
    %p150 = scmp.le.s32.totalorder 1, %s9
    %p151 = scmp.lt.s32.totalorder %s9, 5
    %p152 = pnand %p150, %p151
    %p153 = pneg %p152
    // Predicated region
    $region29: #{tpu_custom_call.1} parent=5 // pred_check
      _
    $region30: #{tpu_custom_call.1} parent=5 // pred_check_branch
      %155 = sbr.rel (%p152) target = $region32
    $region31: #{tpu_custom_call.1} parent=5 // pred_region
      %s156 = ssub.s32 %s9, 1
      %p157 = scmp.lt.s32.totalorder %s18, 1
      %s158 = scalar_select %p157, %s18, 1
      %s159 = smul.addr %s158, 36
      %s160 = smul.addr %s159, 8
      %s161 = scalar_lea.vmem %s0, %s160
      %p162 = pneg %p47
      %p163 = pneg %p44
      %p164 = pneg %p68
      %p165 = pneg %p65
      %p166 = pneg %p89
      %p167 = pneg %p86
      %p168 = pneg %p117
      %p169 = pneg %p114
      %s170 = smul.u32 16, %s19
      %p171 = scmp.lt.s32.totalorder %s18, 1
      %s172 = scalar_select %p171, %s18, 1
      %p173 = scmp.lt.s32.totalorder %s170, 31
      %s174 = scalar_select %p173, %s170, 31
      %s175 = smul.addr %s172, 32
      %s176 = sadd.s32 %s174, %s175
      %s177 = smul.addr %s176, 8
      %s178 = scalar_lea.vmem %s3, %s177
      %p179 = scmp.lt.s32.totalorder %s18, 1
      %s180 = scalar_select %p179, %s18, 1
      %s181 = smul.addr %s180, 36
      %s182 = smul.addr %s181, 8
      %s183 = scalar_lea.vmem %s0, %s182
      %s184 = smul.u32 16, %s19
      %p185 = scmp.lt.s32.totalorder %s18, 1
      %s186 = scalar_select %p185, %s18, 1
      %p187 = scmp.lt.s32.totalorder %s184, 31
      %s188 = scalar_select %p187, %s184, 31
      %s189 = smul.addr %s186, 32
      %s190 = sadd.s32 %s188, %s189
      %s191 = smul.addr %s190, 8
      %s192 = scalar_lea.vmem %s3, %s191
      %s193 = smul.u32 16, %s19
      %s194 = smul.u32 %s19, 8
      %s195 = smul.u32 %s194, 16
      %s196 = scalar_lea.vmem %s183, %s195
      %v197 = vld [vmem:[%s196] sm:$0xff]
      %v198 = vld [vmem:[%s196 + $0x8] sm:$0xff]
      %v199 = vld [vmem:[%s196 + $0x10] sm:$0xff]
      %v200 = vld [vmem:[%s196 + $0x18] sm:$0xff]
      %v201 = vld [vmem:[%s196 + $0x20] sm:$0xff]
      %v202 = vld [vmem:[%s196 + $0x28] sm:$0xff]
      %v203 = vld [vmem:[%s196 + $0x30] sm:$0xff]
      %v204 = vld [vmem:[%s196 + $0x38] sm:$0xff]
      %v205 = vld [vmem:[%s196 + $0x40] sm:$0xff]
      %v206 = vld [vmem:[%s196 + $0x48] sm:$0xff]
      %v207 = vld [vmem:[%s196 + $0x50] sm:$0xff]
      %v208 = vld [vmem:[%s196 + $0x58] sm:$0xff]
      %v209 = vld [vmem:[%s196 + $0x60] sm:$0xff]
      %v210 = vld [vmem:[%s196 + $0x68] sm:$0xff]
      %v211 = vld [vmem:[%s196 + $0x70] sm:$0xff]
      %v212 = vld [vmem:[%s196 + $0x78] sm:$0xff]
      %v213 = vld [vmem:[%s1] sm:$0xff]
      %v214 = vld [vmem:[%s1 + $0x8] sm:$0xf]
      %s215 = sadd.s32 %s194, 1
      %s216 = smul.u32 %s215, 16
      %s217 = scalar_lea.vmem %s183, %s216
      %v218 = vld [vmem:[%s217] sm:$0xff]
      %v219 = vld [vmem:[%s217 + $0x8] sm:$0xff]
      %v220 = vld [vmem:[%s217 + $0x10] sm:$0xff]
      %v221 = vld [vmem:[%s217 + $0x18] sm:$0xff]
      %v222 = vld [vmem:[%s217 + $0x20] sm:$0xff]
      %v223 = vld [vmem:[%s217 + $0x28] sm:$0xff]
      %v224 = vld [vmem:[%s217 + $0x30] sm:$0xff]
      %v225 = vld [vmem:[%s217 + $0x38] sm:$0xff]
      %v226 = vld [vmem:[%s217 + $0x40] sm:$0xff]
      %v227 = vld [vmem:[%s217 + $0x48] sm:$0xff]
      %v228 = vld [vmem:[%s217 + $0x50] sm:$0xff]
      %v229 = vld [vmem:[%s217 + $0x58] sm:$0xff]
      %v230 = vld [vmem:[%s217 + $0x60] sm:$0xff]
      %v231 = vld [vmem:[%s217 + $0x68] sm:$0xff]
      %v232 = vld [vmem:[%s217 + $0x70] sm:$0xff]
      %v233 = vld [vmem:[%s217 + $0x78] sm:$0xff]
      %s234 = scalar_lea.vmem %s1, 16
      %v235 = vld [vmem:[%s234] sm:$0xff]
      %v236 = vld [vmem:[%s234 + $0x8] sm:$0xf]
      %vm237 = vcmask 97280
      %v239 = vsel %vm237, %v218, 0
      %v242 = vsel %vm237, %v219, 0
      %v245 = vsel %vm237, %v220, 0
      %v248 = vsel %vm237, %v221, 0
      %v251 = vsel %vm237, %v222, 0
      %v254 = vsel %vm237, %v223, 0
      %v257 = vsel %vm237, %v224, 0
      %v260 = vsel %vm237, %v225, 0
      %v263 = vsel %vm237, %v226, 0
      %v266 = vsel %vm237, %v227, 0
      %v269 = vsel %vm237, %v228, 0
      %v272 = vsel %vm237, %v229, 0
      %v275 = vsel %vm237, %v230, 0
      %v278 = vsel %vm237, %v231, 0
      %v281 = vsel %vm237, %v232, 0
      %v284 = vsel %vm237, %v233, 0
      %vm286 = vcmask 1043456
      %v288 = vsel %vm286, %v236, 0
      %290 = vmatprep.subr.mxu0 0.0
      %291 = vmatpush1.msra.mxu0 %v235
      %292 = vmatprep.subr.mxu0 0.0
      %293 = vmatpush1.msra.mxu0 %v288
      %294 = vmatprep.subr.mxu0 0.0
      %295 = vmatpush1.msra.mxu0 0.0
      %296 = vmatprep.subr.mxu0 0.0
      %297 = vmatpush1.msra.mxu0 0.0
      %298 = vmatprep.subr.mxu0 0.0
      %299 = vmatpush1.msra.mxu0 0.0
      %300 = vmatprep.subr.mxu0 0.0
      %301 = vmatpush1.msra.mxu0 0.0
      %302 = vmatprep.subr.mxu0 0.0
      %303 = vmatpush1.msra.mxu0 0.0
      %304 = vmatprep.subr.mxu0 0.0
      %305 = vmatpush1.msra.mxu0 0.0
      %306 = vmatprep.subr.mxu0 0.0
      %307 = vmatpush1.msra.mxu0 0.0
      %308 = vmatprep.subr.mxu0 0.0
      %309 = vmatpush1.msra.mxu0 0.0
      %310 = vmatprep.subr.mxu0 0.0
      %311 = vmatpush1.msra.mxu0 0.0
      %312 = vmatprep.subr.mxu0 0.0
      %313 = vmatpush1.msra.mxu0 0.0
      %314 = vmatprep.subr.mxu0 0.0
      %315 = vmatpush1.msra.mxu0 0.0
      %316 = vmatprep.subr.mxu0 0.0
      %317 = vmatpush1.msra.mxu0 0.0
      %318 = vmatprep.subr.mxu0 0.0
      %319 = vmatpush1.msra.mxu0 0.0
      %320 = vmatprep.subr.mxu0 0.0
      %321 = vmatpush1.msra.mxu0 0.0
      %322 = vmatprep.subr.mxu0 0.0
      %323 = vmatpush1.msra.mxu0 0.0
      %324 = vmatprep.subr.mxu0 0.0
      %325 = vmatpush1.msra.mxu0 0.0
      %326 = vmatprep.subr.mxu0 0.0
      %327 = vmatpush1.msra.mxu0 0.0
      %328 = vmatprep.subr.mxu0 0.0
      %329 = vmatpush1.msra.mxu0 0.0
      %330 = vmatprep.subr.mxu0 0.0
      %331 = vmatpush1.msra.mxu0 0.0
      %332 = vmatprep.subr.mxu0 0.0
      %333 = vmatpush1.msra.mxu0 0.0
      %334 = vmatprep.subr.mxu0 0.0
      %335 = vmatpush1.msra.mxu0 0.0
      %336 = vmatprep.subr.mxu0 0.0
      %337 = vmatpush1.msra.mxu0 0.0
      %338 = vmatprep.subr.mxu0 0.0
      %339 = vmatpush1.msra.mxu0 0.0
      %340 = vmatprep.subr.mxu0 0.0
      %341 = vmatpush1.msra.mxu0 0.0
      %342 = vmatprep.subr.mxu0 0.0
      %343 = vmatpush1.msra.mxu0 0.0
      %344 = vmatprep.subr.mxu0 0.0
      %345 = vmatpush1.msra.mxu0 0.0
      %346 = vmatprep.subr.mxu0 0.0
      %347 = vmatpush1.msra.mxu0 0.0
      %348 = vmatprep.subr.mxu0 0.0
      %349 = vmatpush1.msra.mxu0 0.0
      %350 = vmatprep.subr.mxu0 0.0
      %351 = vmatpush1.msra.mxu0 0.0
      %352 = vmatprep.subr.mxu0 0.0
      %353 = vmatpush1.msra.mxu0 0.0
      %354 = vmatprep.mubr.f32.mxu0 0.0
      %355 = vmatmul.mubr.f32.gmra.mrb[0].mxu0 %v239
      %v356 = vpop.f32.mrb[0].mxu0
      %v357 = vadd.f32 0.0, %v356
      %v358 = vpop.f32.mrb[0].mxu0
      %359 = vmatprep.mubr.f32.mxu0 0.0
      %360 = vmatmul.mubr.f32.gmra.mrb[0].mxu0 %v242
      %v361 = vpop.f32.mrb[0].mxu0
      %v362 = vadd.f32 0.0, %v361
      %v363 = vpop.f32.mrb[0].mxu0
      %364 = vmatprep.mubr.f32.mxu0 0.0
      %365 = vmatmul.mubr.f32.gmra.mrb[0].mxu0 %v245
      %v366 = vpop.f32.mrb[0].mxu0
      %v367 = vadd.f32 0.0, %v366
      %v368 = vpop.f32.mrb[0].mxu0
      %369 = vmatprep.mubr.f32.mxu0 0.0
      %370 = vmatmul.mubr.f32.gmra.mrb[0].mxu0 %v248
      %v371 = vpop.f32.mrb[0].mxu0
      %v372 = vadd.f32 0.0, %v371
      %v373 = vpop.f32.mrb[0].mxu0
      %374 = vmatprep.mubr.f32.mxu0 0.0
      %375 = vmatmul.mubr.f32.gmra.mrb[0].mxu0 %v251
      %v376 = vpop.f32.mrb[0].mxu0
      %v377 = vadd.f32 0.0, %v376
      %v378 = vpop.f32.mrb[0].mxu0
      %379 = vmatprep.mubr.f32.mxu0 0.0
      %380 = vmatmul.mubr.f32.gmra.mrb[0].mxu0 %v254
      %v381 = vpop.f32.mrb[0].mxu0
      %v382 = vadd.f32 0.0, %v381
      %v383 = vpop.f32.mrb[0].mxu0
      %384 = vmatprep.mubr.f32.mxu0 0.0
      %385 = vmatmul.mubr.f32.gmra.mrb[0].mxu0 %v257
      %v386 = vpop.f32.mrb[0].mxu0
      %v387 = vadd.f32 0.0, %v386
      %v388 = vpop.f32.mrb[0].mxu0
      %389 = vmatprep.mubr.f32.mxu0 0.0
      %390 = vmatmul.mubr.f32.gmra.mrb[0].mxu0 %v260
      %v391 = vpop.f32.mrb[0].mxu0
      %v392 = vadd.f32 0.0, %v391
      %v393 = vpop.f32.mrb[0].mxu0
      %394 = vmatprep.mubr.f32.mxu0 0.0
      %395 = vmatmul.mubr.f32.gmra.mrb[0].mxu0 %v263
      %v396 = vpop.f32.mrb[0].mxu0
      %v397 = vadd.f32 0.0, %v396
      %v398 = vpop.f32.mrb[0].mxu0
      %399 = vmatprep.mubr.f32.mxu0 0.0
      %400 = vmatmul.mubr.f32.gmra.mrb[0].mxu0 %v266
      %v401 = vpop.f32.mrb[0].mxu0
      %v402 = vadd.f32 0.0, %v401
      %v403 = vpop.f32.mrb[0].mxu0
      %404 = vmatprep.mubr.f32.mxu0 0.0
      %405 = vmatmul.mubr.f32.gmra.mrb[0].mxu0 %v269
      %v406 = vpop.f32.mrb[0].mxu0
      %v407 = vadd.f32 0.0, %v406
      %v408 = vpop.f32.mrb[0].mxu0
      %409 = vmatprep.mubr.f32.mxu0 0.0
      %410 = vmatmul.mubr.f32.gmra.mrb[0].mxu0 %v272
      %v411 = vpop.f32.mrb[0].mxu0
      %v412 = vadd.f32 0.0, %v411
      %v413 = vpop.f32.mrb[0].mxu0
      %414 = vmatprep.mubr.f32.mxu0 0.0
      %415 = vmatmul.mubr.f32.gmra.mrb[0].mxu0 %v275
      %v416 = vpop.f32.mrb[0].mxu0
      %v417 = vadd.f32 0.0, %v416
      %v418 = vpop.f32.mrb[0].mxu0
      %419 = vmatprep.mubr.f32.mxu0 0.0
      %420 = vmatmul.mubr.f32.gmra.mrb[0].mxu0 %v278
      %v421 = vpop.f32.mrb[0].mxu0
      %v422 = vadd.f32 0.0, %v421
      %v423 = vpop.f32.mrb[0].mxu0
      %424 = vmatprep.mubr.f32.mxu0 0.0
      %425 = vmatmul.mubr.f32.gmra.mrb[0].mxu0 %v281
      %v426 = vpop.f32.mrb[0].mxu0
      %v427 = vadd.f32 0.0, %v426
      %v428 = vpop.f32.mrb[0].mxu0
      %429 = vmatprep.mubr.f32.mxu0 0.0
      %430 = vmatmul.mubr.f32.gmra.mrb[0].mxu0 %v284
      %v431 = vpop.f32.mrb[0].mxu0
      %v432 = vadd.f32 0.0, %v431
      %v433 = vpop.f32.mrb[0].mxu0
      %434 = vdwg.mxu0
      %v436 = vsel %vm237, %v197, 0
      %v439 = vsel %vm237, %v198, 0
      %v442 = vsel %vm237, %v199, 0
      %v445 = vsel %vm237, %v200, 0
      %v448 = vsel %vm237, %v201, 0
      %v451 = vsel %vm237, %v202, 0
      %v454 = vsel %vm237, %v203, 0
      %v457 = vsel %vm237, %v204, 0
      %v460 = vsel %vm237, %v205, 0
      %v463 = vsel %vm237, %v206, 0
      %v466 = vsel %vm237, %v207, 0
      %v469 = vsel %vm237, %v208, 0
      %v472 = vsel %vm237, %v209, 0
      %v475 = vsel %vm237, %v210, 0
      %v478 = vsel %vm237, %v211, 0
      %v481 = vsel %vm237, %v212, 0
      %v484 = vsel %vm286, %v214, 0
      %486 = vmatprep.subr.mxu0 0.0
      %487 = vmatpush1.msra.mxu0 %v213
      %488 = vmatprep.subr.mxu0 0.0
      %489 = vmatpush1.msra.mxu0 %v484
      %490 = vmatprep.subr.mxu0 0.0
      %491 = vmatpush1.msra.mxu0 0.0
      %492 = vmatprep.subr.mxu0 0.0
      %493 = vmatpush1.msra.mxu0 0.0
      %494 = vmatprep.subr.mxu0 0.0
      %495 = vmatpush1.msra.mxu0 0.0
      %496 = vmatprep.subr.mxu0 0.0
      %497 = vmatpush1.msra.mxu0 0.0
      %498 = vmatprep.subr.mxu0 0.0
      %499 = vmatpush1.msra.mxu0 0.0
      %500 = vmatprep.subr.mxu0 0.0
      %501 = vmatpush1.msra.mxu0 0.0
      %502 = vmatprep.subr.mxu0 0.0
      %503 = vmatpush1.msra.mxu0 0.0
      %504 = vmatprep.subr.mxu0 0.0
      %505 = vmatpush1.msra.mxu0 0.0
      %506 = vmatprep.subr.mxu0 0.0
      %507 = vmatpush1.msra.mxu0 0.0
      %508 = vmatprep.subr.mxu0 0.0
      %509 = vmatpush1.msra.mxu0 0.0
      %510 = vmatprep.subr.mxu0 0.0
      %511 = vmatpush1.msra.mxu0 0.0
      %512 = vmatprep.subr.mxu0 0.0
      %513 = vmatpush1.msra.mxu0 0.0
      %514 = vmatprep.subr.mxu0 0.0
      %515 = vmatpush1.msra.mxu0 0.0
      %516 = vmatprep.subr.mxu0 0.0
      %517 = vmatpush1.msra.mxu0 0.0
      %518 = vmatprep.subr.mxu0 0.0
      %519 = vmatpush1.msra.mxu0 0.0
      %520 = vmatprep.subr.mxu0 0.0
      %521 = vmatpush1.msra.mxu0 0.0
      %522 = vmatprep.subr.mxu0 0.0
      %523 = vmatpush1.msra.mxu0 0.0
      %524 = vmatprep.subr.mxu0 0.0
      %525 = vmatpush1.msra.mxu0 0.0
      %526 = vmatprep.subr.mxu0 0.0
      %527 = vmatpush1.msra.mxu0 0.0
      %528 = vmatprep.subr.mxu0 0.0
      %529 = vmatpush1.msra.mxu0 0.0
      %530 = vmatprep.subr.mxu0 0.0
      %531 = vmatpush1.msra.mxu0 0.0
      %532 = vmatprep.subr.mxu0 0.0
      %533 = vmatpush1.msra.mxu0 0.0
      %534 = vmatprep.subr.mxu0 0.0
      %535 = vmatpush1.msra.mxu0 0.0
      %536 = vmatprep.subr.mxu0 0.0
      %537 = vmatpush1.msra.mxu0 0.0
      %538 = vmatprep.subr.mxu0 0.0
      %539 = vmatpush1.msra.mxu0 0.0
      %540 = vmatprep.subr.mxu0 0.0
      %541 = vmatpush1.msra.mxu0 0.0
      %542 = vmatprep.subr.mxu0 0.0
      %543 = vmatpush1.msra.mxu0 0.0
      %544 = vmatprep.subr.mxu0 0.0
      %545 = vmatpush1.msra.mxu0 0.0
      %546 = vmatprep.subr.mxu0 0.0
      %547 = vmatpush1.msra.mxu0 0.0
      %548 = vmatprep.subr.mxu0 0.0
      %549 = vmatpush1.msra.mxu0 0.0
      %550 = vmatprep.mubr.f32.mxu0 0.0
      %551 = vmatmul.mubr.f32.gmra.mrb[0].mxu0 %v436
      %v552 = vpop.f32.mrb[0].mxu0
      %v553 = vadd.f32 %v357, %v552
      %v554 = vpop.f32.mrb[0].mxu0
      %555 = vmatprep.mubr.f32.mxu0 0.0
      %556 = vmatmul.mubr.f32.gmra.mrb[0].mxu0 %v439
      %v557 = vpop.f32.mrb[0].mxu0
      %v558 = vadd.f32 %v362, %v557
      %v559 = vpop.f32.mrb[0].mxu0
      %560 = vmatprep.mubr.f32.mxu0 0.0
      %561 = vmatmul.mubr.f32.gmra.mrb[0].mxu0 %v442
      %v562 = vpop.f32.mrb[0].mxu0
      %v563 = vadd.f32 %v367, %v562
      %v564 = vpop.f32.mrb[0].mxu0
      %565 = vmatprep.mubr.f32.mxu0 0.0
      %566 = vmatmul.mubr.f32.gmra.mrb[0].mxu0 %v445
      %v567 = vpop.f32.mrb[0].mxu0
      %v568 = vadd.f32 %v372, %v567
      %v569 = vpop.f32.mrb[0].mxu0
      %570 = vmatprep.mubr.f32.mxu0 0.0
      %571 = vmatmul.mubr.f32.gmra.mrb[0].mxu0 %v448
      %v572 = vpop.f32.mrb[0].mxu0
      %v573 = vadd.f32 %v377, %v572
      %v574 = vpop.f32.mrb[0].mxu0
      %575 = vmatprep.mubr.f32.mxu0 0.0
      %576 = vmatmul.mubr.f32.gmra.mrb[0].mxu0 %v451
      %v577 = vpop.f32.mrb[0].mxu0
      %v578 = vadd.f32 %v382, %v577
      %v579 = vpop.f32.mrb[0].mxu0
      %580 = vmatprep.mubr.f32.mxu0 0.0
      %581 = vmatmul.mubr.f32.gmra.mrb[0].mxu0 %v454
      %v582 = vpop.f32.mrb[0].mxu0
      %v583 = vadd.f32 %v387, %v582
      %v584 = vpop.f32.mrb[0].mxu0
      %585 = vmatprep.mubr.f32.mxu0 0.0
      %586 = vmatmul.mubr.f32.gmra.mrb[0].mxu0 %v457
      %v587 = vpop.f32.mrb[0].mxu0
      %v588 = vadd.f32 %v392, %v587
      %v589 = vpop.f32.mrb[0].mxu0
      %590 = vmatprep.mubr.f32.mxu0 0.0
      %591 = vmatmul.mubr.f32.gmra.mrb[0].mxu0 %v460
      %v592 = vpop.f32.mrb[0].mxu0
      %v593 = vadd.f32 %v397, %v592
      %v594 = vpop.f32.mrb[0].mxu0
      %595 = vmatprep.mubr.f32.mxu0 0.0
      %596 = vmatmul.mubr.f32.gmra.mrb[0].mxu0 %v463
      %v597 = vpop.f32.mrb[0].mxu0
      %v598 = vadd.f32 %v402, %v597
      %v599 = vpop.f32.mrb[0].mxu0
      %600 = vmatprep.mubr.f32.mxu0 0.0
      %601 = vmatmul.mubr.f32.gmra.mrb[0].mxu0 %v466
      %v602 = vpop.f32.mrb[0].mxu0
      %v603 = vadd.f32 %v407, %v602
      %v604 = vpop.f32.mrb[0].mxu0
      %605 = vmatprep.mubr.f32.mxu0 0.0
      %606 = vmatmul.mubr.f32.gmra.mrb[0].mxu0 %v469
      %v607 = vpop.f32.mrb[0].mxu0
      %v608 = vadd.f32 %v412, %v607
      %v609 = vpop.f32.mrb[0].mxu0
      %610 = vmatprep.mubr.f32.mxu0 0.0
      %611 = vmatmul.mubr.f32.gmra.mrb[0].mxu0 %v472
      %v612 = vpop.f32.mrb[0].mxu0
      %v613 = vadd.f32 %v417, %v612
      %v614 = vpop.f32.mrb[0].mxu0
      %615 = vmatprep.mubr.f32.mxu0 0.0
      %616 = vmatmul.mubr.f32.gmra.mrb[0].mxu0 %v475
      %v617 = vpop.f32.mrb[0].mxu0
      %v618 = vadd.f32 %v422, %v617
      %v619 = vpop.f32.mrb[0].mxu0
      %620 = vmatprep.mubr.f32.mxu0 0.0
      %621 = vmatmul.mubr.f32.gmra.mrb[0].mxu0 %v478
      %v622 = vpop.f32.mrb[0].mxu0
      %v623 = vadd.f32 %v427, %v622
      %v624 = vpop.f32.mrb[0].mxu0
      %625 = vmatprep.mubr.f32.mxu0 0.0
      %626 = vmatmul.mubr.f32.gmra.mrb[0].mxu0 %v481
      %v627 = vpop.f32.mrb[0].mxu0
      %v628 = vadd.f32 %v432, %v627
      %v629 = vpop.f32.mrb[0].mxu0
      %630 = vdwg.mxu0
      %s631 = sadd.s32 %s194, 2
      %s632 = smul.u32 %s631, 16
      %s633 = scalar_lea.vmem %s183, %s632
      %v634 = vld [vmem:[%s633] sm:$0xff]
      %v635 = vld [vmem:[%s633 + $0x8] sm:$0xff]
      %v636 = vld [vmem:[%s633 + $0x10] sm:$0xff]
      %v637 = vld [vmem:[%s633 + $0x18] sm:$0xff]
      %v638 = vld [vmem:[%s633 + $0x20] sm:$0xff]
      %v639 = vld [vmem:[%s633 + $0x28] sm:$0xff]
      %v640 = vld [vmem:[%s633 + $0x30] sm:$0xff]
      %v641 = vld [vmem:[%s633 + $0x38] sm:$0xff]
      %v642 = vld [vmem:[%s633 + $0x40] sm:$0xff]
      %v643 = vld [vmem:[%s633 + $0x48] sm:$0xff]
      %v644 = vld [vmem:[%s633 + $0x50] sm:$0xff]
      %v645 = vld [vmem:[%s633 + $0x58] sm:$0xff]
      %v646 = vld [vmem:[%s633 + $0x60] sm:$0xff]
      %v647 = vld [vmem:[%s633 + $0x68] sm:$0xff]
      %v648 = vld [vmem:[%s633 + $0x70] sm:$0xff]
      %v649 = vld [vmem:[%s633 + $0x78] sm:$0xff]
      %s650 = scalar_lea.vmem %s1, 32
      %v651 = vld [vmem:[%s650] sm:$0xff]
      %v652 = vld [vmem:[%s650 + $0x8] sm:$0xf]
      %v654 = vsel %vm237, %v634, 0
      %v657 = vsel %vm237, %v635, 0
      %v660 = vsel %vm237, %v636, 0
      %v663 = vsel %vm237, %v637, 0
      %v666 = vsel %vm237, %v638, 0
      %v669 = vsel %vm237, %v639, 0
      %v672 = vsel %vm237, %v640, 0
      %v675 = vsel %vm237, %v641, 0
      %v678 = vsel %vm237, %v642, 0
      %v681 = vsel %vm237, %v643, 0
      %v684 = vsel %vm237, %v644, 0
      %v687 = vsel %vm237, %v645, 0
      %v690 = vsel %vm237, %v646, 0
      %v693 = vsel %vm237, %v647, 0
      %v696 = vsel %vm237, %v648, 0
      %v699 = vsel %vm237, %v649, 0
      %v702 = vsel %vm286, %v652, 0
      %704 = vmatprep.subr.mxu0 0.0
      %705 = vmatpush1.msra.mxu0 %v651
      %706 = vmatprep.subr.mxu0 0.0
      %707 = vmatpush1.msra.mxu0 %v702
      %708 = vmatprep.subr.mxu0 0.0
      %709 = vmatpush1.msra.mxu0 0.0
      %710 = vmatprep.subr.mxu0 0.0
      %711 = vmatpush1.msra.mxu0 0.0
      %712 = vmatprep.subr.mxu0 0.0
      %713 = vmatpush1.msra.mxu0 0.0
      %714 = vmatprep.subr.mxu0 0.0
      %715 = vmatpush1.msra.mxu0 0.0
      %716 = vmatprep.subr.mxu0 0.0
      %717 = vmatpush1.msra.mxu0 0.0
      %718 = vmatprep.subr.mxu0 0.0
      %719 = vmatpush1.msra.mxu0 0.0
      %720 = vmatprep.subr.mxu0 0.0
      %721 = vmatpush1.msra.mxu0 0.0
      %722 = vmatprep.subr.mxu0 0.0
      %723 = vmatpush1.msra.mxu0 0.0
      %724 = vmatprep.subr.mxu0 0.0
      %725 = vmatpush1.msra.mxu0 0.0
      %726 = vmatprep.subr.mxu0 0.0
      %727 = vmatpush1.msra.mxu0 0.0
      %728 = vmatprep.subr.mxu0 0.0
      %729 = vmatpush1.msra.mxu0 0.0
      %730 = vmatprep.subr.mxu0 0.0
      %731 = vmatpush1.msra.mxu0 0.0
      %732 = vmatprep.subr.mxu0 0.0
      %733 = vmatpush1.msra.mxu0 0.0
      %734 = vmatprep.subr.mxu0 0.0
      %735 = vmatpush1.msra.mxu0 0.0
      %736 = vmatprep.subr.mxu0 0.0
      %737 = vmatpush1.msra.mxu0 0.0
      %738 = vmatprep.subr.mxu0 0.0
      %739 = vmatpush1.msra.mxu0 0.0
      %740 = vmatprep.subr.mxu0 0.0
      %741 = vmatpush1.msra.mxu0 0.0
      %742 = vmatprep.subr.mxu0 0.0
      %743 = vmatpush1.msra.mxu0 0.0
      %744 = vmatprep.subr.mxu0 0.0
      %745 = vmatpush1.msra.mxu0 0.0
      %746 = vmatprep.subr.mxu0 0.0
      %747 = vmatpush1.msra.mxu0 0.0
      %748 = vmatprep.subr.mxu0 0.0
      %749 = vmatpush1.msra.mxu0 0.0
      %750 = vmatprep.subr.mxu0 0.0
      %751 = vmatpush1.msra.mxu0 0.0
      %752 = vmatprep.subr.mxu0 0.0
      %753 = vmatpush1.msra.mxu0 0.0
      %754 = vmatprep.subr.mxu0 0.0
      %755 = vmatpush1.msra.mxu0 0.0
      %756 = vmatprep.subr.mxu0 0.0
      %757 = vmatpush1.msra.mxu0 0.0
      %758 = vmatprep.subr.mxu0 0.0
      %759 = vmatpush1.msra.mxu0 0.0
      %760 = vmatprep.subr.mxu0 0.0
      %761 = vmatpush1.msra.mxu0 0.0
      %762 = vmatprep.subr.mxu0 0.0
      %763 = vmatpush1.msra.mxu0 0.0
      %764 = vmatprep.subr.mxu0 0.0
      %765 = vmatpush1.msra.mxu0 0.0
      %766 = vmatprep.subr.mxu0 0.0
      %767 = vmatpush1.msra.mxu0 0.0
      %768 = vmatprep.mubr.f32.mxu0 0.0
      %769 = vmatmul.mubr.f32.gmra.mrb[0].mxu0 %v654
      %v770 = vpop.f32.mrb[0].mxu0
      %v771 = vadd.f32 0.0, %v770
      %v772 = vpop.f32.mrb[0].mxu0
      %773 = vmatprep.mubr.f32.mxu0 0.0
      %774 = vmatmul.mubr.f32.gmra.mrb[0].mxu0 %v657
      %v775 = vpop.f32.mrb[0].mxu0
      %v776 = vadd.f32 0.0, %v775
      %v777 = vpop.f32.mrb[0].mxu0
      %778 = vmatprep.mubr.f32.mxu0 0.0
      %779 = vmatmul.mubr.f32.gmra.mrb[0].mxu0 %v660
      %v780 = vpop.f32.mrb[0].mxu0
      %v781 = vadd.f32 0.0, %v780
      %v782 = vpop.f32.mrb[0].mxu0
      %783 = vmatprep.mubr.f32.mxu0 0.0
      %784 = vmatmul.mubr.f32.gmra.mrb[0].mxu0 %v663
      %v785 = vpop.f32.mrb[0].mxu0
      %v786 = vadd.f32 0.0, %v785
      %v787 = vpop.f32.mrb[0].mxu0
      %788 = vmatprep.mubr.f32.mxu0 0.0
      %789 = vmatmul.mubr.f32.gmra.mrb[0].mxu0 %v666
      %v790 = vpop.f32.mrb[0].mxu0
      %v791 = vadd.f32 0.0, %v790
      %v792 = vpop.f32.mrb[0].mxu0
      %793 = vmatprep.mubr.f32.mxu0 0.0
      %794 = vmatmul.mubr.f32.gmra.mrb[0].mxu0 %v669
      %v795 = vpop.f32.mrb[0].mxu0
      %v796 = vadd.f32 0.0, %v795
      %v797 = vpop.f32.mrb[0].mxu0
      %798 = vmatprep.mubr.f32.mxu0 0.0
      %799 = vmatmul.mubr.f32.gmra.mrb[0].mxu0 %v672
      %v800 = vpop.f32.mrb[0].mxu0
      %v801 = vadd.f32 0.0, %v800
      %v802 = vpop.f32.mrb[0].mxu0
      %803 = vmatprep.mubr.f32.mxu0 0.0
      %804 = vmatmul.mubr.f32.gmra.mrb[0].mxu0 %v675
      %v805 = vpop.f32.mrb[0].mxu0
      %v806 = vadd.f32 0.0, %v805
      %v807 = vpop.f32.mrb[0].mxu0
      %808 = vmatprep.mubr.f32.mxu0 0.0
      %809 = vmatmul.mubr.f32.gmra.mrb[0].mxu0 %v678
      %v810 = vpop.f32.mrb[0].mxu0
      %v811 = vadd.f32 0.0, %v810
      %v812 = vpop.f32.mrb[0].mxu0
      %813 = vmatprep.mubr.f32.mxu0 0.0
      %814 = vmatmul.mubr.f32.gmra.mrb[0].mxu0 %v681
      %v815 = vpop.f32.mrb[0].mxu0
      %v816 = vadd.f32 0.0, %v815
      %v817 = vpop.f32.mrb[0].mxu0
      %818 = vmatprep.mubr.f32.mxu0 0.0
      %819 = vmatmul.mubr.f32.gmra.mrb[0].mxu0 %v684
      %v820 = vpop.f32.mrb[0].mxu0
      %v821 = vadd.f32 0.0, %v820
      %v822 = vpop.f32.mrb[0].mxu0
      %823 = vmatprep.mubr.f32.mxu0 0.0
      %824 = vmatmul.mubr.f32.gmra.mrb[0].mxu0 %v687
      %v825 = vpop.f32.mrb[0].mxu0
      %v826 = vadd.f32 0.0, %v825
      %v827 = vpop.f32.mrb[0].mxu0
      %828 = vmatprep.mubr.f32.mxu0 0.0
      %829 = vmatmul.mubr.f32.gmra.mrb[0].mxu0 %v690
      %v830 = vpop.f32.mrb[0].mxu0
      %v831 = vadd.f32 0.0, %v830
      %v832 = vpop.f32.mrb[0].mxu0
      %833 = vmatprep.mubr.f32.mxu0 0.0
      %834 = vmatmul.mubr.f32.gmra.mrb[0].mxu0 %v693
      %v835 = vpop.f32.mrb[0].mxu0
      %v836 = vadd.f32 0.0, %v835
      %v837 = vpop.f32.mrb[0].mxu0
      %838 = vmatprep.mubr.f32.mxu0 0.0
      %839 = vmatmul.mubr.f32.gmra.mrb[0].mxu0 %v696
      %v840 = vpop.f32.mrb[0].mxu0
      %v841 = vadd.f32 0.0, %v840
      %v842 = vpop.f32.mrb[0].mxu0
      %843 = vmatprep.mubr.f32.mxu0 0.0
      %844 = vmatmul.mubr.f32.gmra.mrb[0].mxu0 %v699
      %v845 = vpop.f32.mrb[0].mxu0
      %v846 = vadd.f32 0.0, %v845
      %v847 = vpop.f32.mrb[0].mxu0
      %848 = vdwg.mxu0
      %v849 = vadd.f32 %v553, %v771
      %v850 = vadd.f32 %v558, %v776
      %v851 = vadd.f32 %v563, %v781
      %v852 = vadd.f32 %v568, %v786
      %v853 = vadd.f32 %v573, %v791
      %v854 = vadd.f32 %v578, %v796
      %v855 = vadd.f32 %v583, %v801
      %v856 = vadd.f32 %v588, %v806
      %v857 = vadd.f32 %v593, %v811
      %v858 = vadd.f32 %v598, %v816
      %v859 = vadd.f32 %v603, %v821
      %v860 = vadd.f32 %v608, %v826
      %v861 = vadd.f32 %v613, %v831
      %v862 = vadd.f32 %v618, %v836
      %v863 = vadd.f32 %v623, %v841
      %v864 = vadd.f32 %v628, %v846
      %v865 = vld [vmem:[%s2] sm:$0x1]
      %v867 = vlaneseq
      %v868 = vshrl.u32 %v867, 7
      %v869 = vsub.s32 0, %v868
      %v870 = vrot.slane %v865, %v869
      %v872 = vadd.f32 %v849, %v870
      %v873 = vadd.f32 %v850, %v870
      %v874 = vadd.f32 %v851, %v870
      %v875 = vadd.f32 %v852, %v870
      %v876 = vadd.f32 %v853, %v870
      %v877 = vadd.f32 %v854, %v870
      %v878 = vadd.f32 %v855, %v870
      %v879 = vadd.f32 %v856, %v870
      %v880 = vadd.f32 %v857, %v870
      %v881 = vadd.f32 %v858, %v870
      %v882 = vadd.f32 %v859, %v870
      %v883 = vadd.f32 %v860, %v870
      %v884 = vadd.f32 %v861, %v870
      %v885 = vadd.f32 %v862, %v870
      %v886 = vadd.f32 %v863, %v870
      %v887 = vadd.f32 %v864, %v870
      %vm888 = vcmask 261120
      %889 = vst.msk [vmem:[%s192] sm:$0xff] %vm888, %v872
      %890 = vst.msk [vmem:[%s192 + $0x8] sm:$0xff] %vm888, %v873
      %891 = vst.msk [vmem:[%s192 + $0x10] sm:$0xff] %vm888, %v874
      %892 = vst.msk [vmem:[%s192 + $0x18] sm:$0xff] %vm888, %v875
      %893 = vst.msk [vmem:[%s192 + $0x20] sm:$0xff] %vm888, %v876
      %894 = vst.msk [vmem:[%s192 + $0x28] sm:$0xff] %vm888, %v877
      %895 = vst.msk [vmem:[%s192 + $0x30] sm:$0xff] %vm888, %v878
      %896 = vst.msk [vmem:[%s192 + $0x38] sm:$0xff] %vm888, %v879
      %897 = vst.msk [vmem:[%s192 + $0x40] sm:$0xff] %vm888, %v880
      %898 = vst.msk [vmem:[%s192 + $0x48] sm:$0xff] %vm888, %v881
      %899 = vst.msk [vmem:[%s192 + $0x50] sm:$0xff] %vm888, %v882
      %900 = vst.msk [vmem:[%s192 + $0x58] sm:$0xff] %vm888, %v883
      %901 = vst.msk [vmem:[%s192 + $0x60] sm:$0xff] %vm888, %v884
      %902 = vst.msk [vmem:[%s192 + $0x68] sm:$0xff] %vm888, %v885
      %903 = vst.msk [vmem:[%s192 + $0x70] sm:$0xff] %vm888, %v886
      %904 = vst.msk [vmem:[%s192 + $0x78] sm:$0xff] %vm888, %v887
      %s905 = smul.u32 16, %s19
      %p906 = scmp.lt.s32.totalorder %s18, 1
      %s907 = scalar_select %p906, %s18, 1
      %p908 = scmp.lt.s32.totalorder %s905, 31
      %s909 = scalar_select %p908, %s905, 31
      %s910 = smul.addr %s907, 32
      %s911 = sadd.s32 %s909, %s910
      %s912 = smul.addr %s911, 8
      %s913 = scalar_lea.vmem %s3, %s912
      // Predicated region
      $region33: #{tpu_custom_call.1} parent=31 // pred_check
        %p914 = pneg %p114
      $region34: #{tpu_custom_call.1} parent=31 // pred_check_branch
        %916 = sbr.rel (%p914) target = $region36
      $region35: #{tpu_custom_call.1} parent=31 // pred_region
        %s917 = smul.u32 16, %s19
      $region36: #{tpu_custom_call.1} parent=31 // pred_fallthru
        _
    $region32: #{tpu_custom_call.1} parent=5 // pred_fallthru
      _
    %p918 = scmp.le.s32.totalorder 2, %s9
    // Predicated region
    $region37: #{tpu_custom_call.1} parent=5 // pred_check
      %p919 = pneg %p918
    $region38: #{tpu_custom_call.1} parent=5 // pred_check_branch
      %921 = sbr.rel (%p919) target = $region40
    $region39: #{tpu_custom_call.1} parent=5 // pred_region
      %s922 = ssub.s32 %s9, 2
      // Predicated region
      $region41: #{tpu_custom_call.1} parent=39 // pred_check
        %p923 = pneg %p120
      $region42: #{tpu_custom_call.1} parent=39 // pred_check_branch
        %925 = sbr.rel (%p923) target = $region44
      $region43: #{tpu_custom_call.1} parent=39 // pred_region
        %s926 = smul.u32 16, %s21
        %p927 = scmp.lt.s32.totalorder %s20, 1
        %s928 = scalar_select %p927, %s20, 1
        %p929 = scmp.lt.s32.totalorder %s926, 31
        %s930 = scalar_select %p929, %s926, 31
        %s931 = smul.addr %s928, 32
        %s932 = sadd.s32 %s930, %s931
        %s933 = smul.addr %s932, 8
        %s934 = scalar_lea.vmem %s3, %s933
      $region44: #{tpu_custom_call.1} parent=39 // pred_fallthru
        _
    $region40: #{tpu_custom_call.1} parent=5 // pred_fallthru
      _
  $region6: #{tpu_custom_call.1} parent=0 // loop_footer
    %s13 = sadd.s32 1, %s9
  $region7: #{tpu_custom_call.1} parent=0 // loop_footer_branch
    %8 = sbr.rel target = $region3
  $region8: #{tpu_custom_call.1} parent=0 // loop_exit
    _

</llo_original>
